<compile_context>
chip_gen: v7x
topology: tpu7x:2x2x1
jax: 0.10.0
libtpu: 0.0.40
codegen_flags: <defaults>
</compile_context>

<pallas_src>
import functools

import jax
import jax.numpy as jnp
from jax.experimental import pallas as pl
from jax.experimental.pallas import tpu as pltpu


def mlp_kernel(x_ref, w1_ref, b1_ref, w2_ref, b2_ref, w3_ref, b3_ref, o_ref):
    # x_ref : (TILE_B, IN) f32   (natural row-major layout; cast fused in-kernel)
    # wN    : PyTorch (out, in) layout in the MXU dtype; w3/b3 row-padded to 8.
    # bN    : (out, 1) f32  -> broadcasts along the lane (batch) axis.
    # o_ref : (TILE_B, OUT)
    xm = x_ref[...].astype(w1_ref.dtype)
    # Layer 1: contract x's last (feature) dim -> (H1, TILE_B); batch rides lanes.
    h = jax.lax.dot_general(w1_ref[...], xm, (((1,), (1,)), ((), ())),
                            preferred_element_type=jnp.float32)
    h = jnp.maximum(h + b1_ref[...], 0.0)
    # Layer 2: (H2, TILE_B)
    h = jnp.dot(w2_ref[...], h.astype(w2_ref.dtype),
                preferred_element_type=jnp.float32)
    h = jnp.maximum(h + b2_ref[...], 0.0)
    # Layer 3: (OUT_PAD, TILE_B); output rows padded to a sublane multiple (8).
    y = jnp.dot(w3_ref[...], h.astype(w3_ref.dtype),
                preferred_element_type=jnp.float32)
    y = y + b3_ref[...]
    # In-kernel transpose to row-major (XLU), drop pad rows, store directly.
    o_ref[...] = y.T[:, : o_ref.shape[1]].astype(o_ref.dtype)


def _auto_tile_b(B: int) -> int:
    """Batch-tile size: big tiles amortize the ~0.35us per-grid-step overhead
    (measured 29%->85% of HBM roofline going 128->512 on v6e), but keep >=2
    tiles when the batch allows so the 'parallel' axis can still split across
    the two TensorCores of a v7x chip. VMEM use is trivial at any of these."""
    if B <= 128:
        return 8 * pl.cdiv(B, 8)              # one (possibly padded) tile
    bp = 128 * pl.cdiv(B, 128)
    tile = min(1024, bp)
    if pl.cdiv(bp, tile) < 2:                 # would collapse to a single tile
        tile = max(128, (bp // 2 // 128) * 128)
    return tile


@functools.partial(jax.jit, static_argnames=("tile_b", "mxu_dtype", "out_dtype"))
def mlp_forward(x, w1, b1, w2, b2, w3, b3, *, tile_b=None,
                mxu_dtype=jnp.bfloat16, out_dtype=jnp.float32):
    """iris MLP forward.

    x : (B, in_features) f32           (row-major, PyTorch convention)
    wN: (out_features, in_features)    (PyTorch nn.Linear layout)
    bN: (out_features,)
    returns (B, output) in `out_dtype` (f32 default; pass bf16 to halve output
                                        HBM bytes if downstream tolerates it)
    """
    B, in_f = x.shape
    h1 = w1.shape[0]
    h2 = w2.shape[0]
    out_f = w3.shape[0]
    if tile_b is None:
        tile_b = _auto_tile_b(B)
    grid = (pl.cdiv(B, tile_b),)

    # Weights in the MXU dtype; bias-add + ReLU epilogue stays f32 in-kernel.
    w1m = w1.astype(mxu_dtype)
    w2m = w2.astype(mxu_dtype)
    b1c = b1.reshape(h1, 1).astype(jnp.float32)
    b2c = b2.reshape(h2, 1).astype(jnp.float32)

    # Zero-pad the final layer's output rows to a sublane multiple (8) so the
    # in-kernel result transpose is cleanly aligned; pad rows are exact zeros
    # and are sliced off before the store.
    out_pad = 8 * pl.cdiv(out_f, 8)
    w3m = jnp.zeros((out_pad, h2), mxu_dtype).at[:out_f].set(w3.astype(mxu_dtype))
    b3c = jnp.zeros((out_pad, 1), jnp.float32).at[:out_f, 0].set(b3.astype(jnp.float32))

    # Constant block index -> weights/biases DMA'd once, resident across tiles.
    def const_spec(r, c):
        return pl.BlockSpec((r, c), lambda i: (0, 0))

    flops = 2 * B * (in_f * h1 + h1 * h2 + h2 * out_f)
    bytes_accessed = (
        x.size * x.dtype.itemsize
        + sum(int(a.size) * a.dtype.itemsize for a in (w1m, w2m, w3m, b1c, b2c, b3c))
        + B * out_f * jnp.dtype(out_dtype).itemsize)

    return pl.pallas_call(
        mlp_kernel,
        out_shape=jax.ShapeDtypeStruct((B, out_f), out_dtype),
        grid=grid,
        in_specs=[
            pl.BlockSpec((tile_b, in_f), lambda i: (i, 0)),   # x: batch-tiled rows
            const_spec(h1, in_f), const_spec(h1, 1),
            const_spec(h2, h1), const_spec(h2, 1),
            const_spec(out_pad, h2), const_spec(out_pad, 1),
        ],
        out_specs=pl.BlockSpec((tile_b, out_f), lambda i: (i, 0)),
        compiler_params=pltpu.CompilerParams(
            dimension_semantics=("parallel",),                # v7x: 2 TCs split batch tiles
        ),
        cost_estimate=pl.CostEstimate(
            flops=flops, transcendentals=0, bytes_accessed=bytes_accessed),
    )(x, w1m, b1c, w2m, b2c, w3m, b3c)


def init_linear(kw, kb, fan_in, fan_out):
    # nn.Linear default init: U(-1/sqrt(fan_in), +1/sqrt(fan_in)), (out, in) layout.
    bound = 1.0 / jnp.sqrt(jnp.float32(fan_in))
    w = jax.random.uniform(kw, (fan_out, fan_in), jnp.float32, -bound, bound)
    b = jax.random.uniform(kb, (fan_out,), jnp.float32, -bound, bound)
    return w, b


if __name__ == "__main__":
    import numpy as np

    input_features, h1, h2, output = 4, 8, 9, 3
    batch = 256  # two 128-row batch tiles -> exercises the parallel batch grid

    key = jax.random.PRNGKey(0)
    kx, k1w, k1b, k2w, k2b, k3w, k3b = jax.random.split(key, 7)

    x = jax.random.normal(kx, (batch, input_features), jnp.float32)
    w1, b1 = init_linear(k1w, k1b, input_features, h1)
    w2, b2 = init_linear(k2w, k2b, h1, h2)
    w3, b3 = init_linear(k3w, k3b, h2, output)

    # float64 NumPy reference (independent of TPU matmul precision modes).
    xn = np.asarray(x, np.float64)
    w1n, b1n = np.asarray(w1, np.float64), np.asarray(b1, np.float64)
    w2n, b2n = np.asarray(w2, np.float64), np.asarray(b2, np.float64)
    w3n, b3n = np.asarray(w3, np.float64), np.asarray(b3, np.float64)
    ref = np.maximum(xn @ w1n.T + b1n, 0.0)
    ref = np.maximum(ref @ w2n.T + b2n, 0.0)
    ref = ref @ w3n.T + b3n

    # Default path: bf16 MXU inputs, f32 epilogue/output.
    out = jax.block_until_ready(mlp_forward(x, w1, b1, w2, b2, w3, b3))
    assert out.shape == (batch, output)
    assert np.allclose(np.asarray(out), ref, atol=5e-2, rtol=5e-2), "bf16 path mismatch"

    # f32 MXU path.
    out32 = jax.block_until_ready(
        mlp_forward(x, w1, b1, w2, b2, w3, b3, mxu_dtype=jnp.float32))
    assert np.allclose(np.asarray(out32), ref, atol=1e-2, rtol=1e-2), "f32 path mismatch"

    # Ragged batch (not a multiple of the 128-row tile) -> Pallas boundary
    # blocks: padded reads, masked writes; no wrapper-side padding copy of x.
    out_r = jax.block_until_ready(mlp_forward(x[:200], w1, b1, w2, b2, w3, b3))
    assert out_r.shape == (200, output)
    assert np.allclose(np.asarray(out_r), ref[:200], atol=5e-2, rtol=5e-2), "ragged mismatch"

    print("KERNEL_OK")
</pallas_src>

<mosaic_0001>
module attributes {stable_mosaic.version = 11 : i64} {
  func.func @mlp_kernel(%arg0: i32, %arg1: memref<128x4xf32, #tpu.memory_space<vmem>>, %arg2: memref<8x4xbf16, #tpu.memory_space<vmem>>, %arg3: memref<8x1xf32, #tpu.memory_space<vmem>>, %arg4: memref<9x8xbf16, #tpu.memory_space<vmem>>, %arg5: memref<9x1xf32, #tpu.memory_space<vmem>>, %arg6: memref<8x9xbf16, #tpu.memory_space<vmem>>, %arg7: memref<8x1xf32, #tpu.memory_space<vmem>>, %arg8: memref<128x3xf32, #tpu.memory_space<vmem>>) attributes {dimension_semantics = [#tpu.dimension_semantics<parallel>], iteration_bounds = array<i64: 2>, scalar_prefetch = 0 : i64, scratch_operands = 0 : i64, tpu.core_type = #tpu.core_type<tc>, window_params = [{transform_indices = @transform_0, window_bounds = array<i64: 128, 4>}, {pipeline_mode = #tpu.pipeline_mode<synchronous>, transform_indices = @transform_1, window_bounds = array<i64: 8, 4>}, {pipeline_mode = #tpu.pipeline_mode<synchronous>, transform_indices = @transform_2, window_bounds = array<i64: 8, 1>}, {pipeline_mode = #tpu.pipeline_mode<synchronous>, transform_indices = @transform_3, window_bounds = array<i64: 9, 8>}, {pipeline_mode = #tpu.pipeline_mode<synchronous>, transform_indices = @transform_4, window_bounds = array<i64: 9, 1>}, {pipeline_mode = #tpu.pipeline_mode<synchronous>, transform_indices = @transform_5, window_bounds = array<i64: 8, 9>}, {pipeline_mode = #tpu.pipeline_mode<synchronous>, transform_indices = @transform_6, window_bounds = array<i64: 8, 1>}, {transform_indices = @transform_7, window_bounds = array<i64: 128, 3>}]} {
    %c0 = arith.constant 0 : index
    %c0_0 = arith.constant 0 : index
    %0 = vector.load %arg1[%c0, %c0_0] : memref<128x4xf32, #tpu.memory_space<vmem>>, vector<128x4xf32>
    %1 = arith.truncf %0 : vector<128x4xf32> to vector<128x4xbf16>
    %c0_1 = arith.constant 0 : index
    %c0_2 = arith.constant 0 : index
    %2 = vector.load %arg2[%c0_1, %c0_2] : memref<8x4xbf16, #tpu.memory_space<vmem>>, vector<8x4xbf16>
    %cst = arith.constant dense<0.000000e+00> : vector<8x128xf32>
    %3 = tpu.matmul %2, %1, %cst {dimension_numbers = #tpu.dot_dimension_numbers<[1], [1], [0], [0], [0, 0, 1, 0], [], []>} : vector<8x4xbf16>, vector<128x4xbf16>, vector<8x128xf32> -> vector<8x128xf32>
    %c0_3 = arith.constant 0 : index
    %c0_4 = arith.constant 0 : index
    %4 = vector.load %arg3[%c0_3, %c0_4] : memref<8x1xf32, #tpu.memory_space<vmem>>, vector<8x1xf32>
    %5 = vector.broadcast %4 : vector<8x1xf32> to vector<8x128xf32>
    %6 = arith.addf %3, %5 : vector<8x128xf32>
    %cst_5 = arith.constant 0.000000e+00 : f32
    %7 = vector.broadcast %cst_5 : f32 to vector<8x128xf32>
    %8 = arith.maximumf %6, %7 : vector<8x128xf32>
    %c0_6 = arith.constant 0 : index
    %c0_7 = arith.constant 0 : index
    %9 = vector.load %arg4[%c0_6, %c0_7] : memref<9x8xbf16, #tpu.memory_space<vmem>>, vector<9x8xbf16>
    %10 = arith.truncf %8 : vector<8x128xf32> to vector<8x128xbf16>
    %cst_8 = arith.constant dense<0.000000e+00> : vector<9x128xf32>
    %11 = tpu.matmul %9, %10, %cst_8 {dimension_numbers = #tpu.dot_dimension_numbers<[1], [0], [0], [1], [0, 0, 1, 1], [], []>} : vector<9x8xbf16>, vector<8x128xbf16>, vector<9x128xf32> -> vector<9x128xf32>
    %c0_9 = arith.constant 0 : index
    %c0_10 = arith.constant 0 : index
    %12 = vector.load %arg5[%c0_9, %c0_10] : memref<9x1xf32, #tpu.memory_space<vmem>>, vector<9x1xf32>
    %13 = vector.broadcast %12 : vector<9x1xf32> to vector<9x128xf32>
    %14 = arith.addf %11, %13 : vector<9x128xf32>
    %cst_11 = arith.constant 0.000000e+00 : f32
    %15 = vector.broadcast %cst_11 : f32 to vector<9x128xf32>
    %16 = arith.maximumf %14, %15 : vector<9x128xf32>
    %c0_12 = arith.constant 0 : index
    %c0_13 = arith.constant 0 : index
    %17 = vector.load %arg6[%c0_12, %c0_13] : memref<8x9xbf16, #tpu.memory_space<vmem>>, vector<8x9xbf16>
    %18 = arith.truncf %16 : vector<9x128xf32> to vector<9x128xbf16>
    %cst_14 = arith.constant dense<0.000000e+00> : vector<8x128xf32>
    %19 = tpu.matmul %17, %18, %cst_14 {dimension_numbers = #tpu.dot_dimension_numbers<[1], [0], [0], [1], [0, 0, 1, 1], [], []>} : vector<8x9xbf16>, vector<9x128xbf16>, vector<8x128xf32> -> vector<8x128xf32>
    %c0_15 = arith.constant 0 : index
    %c0_16 = arith.constant 0 : index
    %20 = vector.load %arg7[%c0_15, %c0_16] : memref<8x1xf32, #tpu.memory_space<vmem>>, vector<8x1xf32>
    %21 = vector.broadcast %20 : vector<8x1xf32> to vector<8x128xf32>
    %22 = arith.addf %19, %21 : vector<8x128xf32>
    %23 = tpu.transpose %22, [1, 0] : vector<8x128xf32> -> vector<128x8xf32>
    %24 = vector.extract_strided_slice %23 {offsets = [0, 0], sizes = [128, 3], strides = [1, 1]} : vector<128x8xf32> to vector<128x3xf32>
    %c0_17 = arith.constant 0 : index
    %c0_18 = arith.constant 0 : index
    %25 = vector.load %arg8[%c0_17, %c0_18] : memref<128x3xf32, #tpu.memory_space<vmem>>, vector<128x3xf32>
    tpu.vector_store %arg8[%c0_17, %c0_18], %24 {strides = array<i32>} : memref<128x3xf32, #tpu.memory_space<vmem>>, vector<128x3xf32>,
    return
  }
  func.func @transform_0(%arg0: i32) -> (i32, i32) {
    %c0_i32 = arith.constant 0 : i32
    %c0_i32_0 = arith.constant 0 : i32
    return %arg0, %c0_i32 : i32, i32
  }
  func.func @transform_1(%arg0: i32) -> (i32, i32) {
    %c0_i32 = arith.constant 0 : i32
    %c0_i32_0 = arith.constant 0 : i32
    %c0_i32_1 = arith.constant 0 : i32
    return %c0_i32, %c0_i32_0 : i32, i32
  }
  func.func @transform_2(%arg0: i32) -> (i32, i32) {
    %c0_i32 = arith.constant 0 : i32
    %c0_i32_0 = arith.constant 0 : i32
    %c0_i32_1 = arith.constant 0 : i32
    return %c0_i32, %c0_i32_0 : i32, i32
  }
  func.func @transform_3(%arg0: i32) -> (i32, i32) {
    %c0_i32 = arith.constant 0 : i32
    %c0_i32_0 = arith.constant 0 : i32
    %c0_i32_1 = arith.constant 0 : i32
    return %c0_i32, %c0_i32_0 : i32, i32
  }
  func.func @transform_4(%arg0: i32) -> (i32, i32) {
    %c0_i32 = arith.constant 0 : i32
    %c0_i32_0 = arith.constant 0 : i32
    %c0_i32_1 = arith.constant 0 : i32
    return %c0_i32, %c0_i32_0 : i32, i32
  }
  func.func @transform_5(%arg0: i32) -> (i32, i32) {
    %c0_i32 = arith.constant 0 : i32
    %c0_i32_0 = arith.constant 0 : i32
    %c0_i32_1 = arith.constant 0 : i32
    return %c0_i32, %c0_i32_0 : i32, i32
  }
  func.func @transform_6(%arg0: i32) -> (i32, i32) {
    %c0_i32 = arith.constant 0 : i32
    %c0_i32_0 = arith.constant 0 : i32
    %c0_i32_1 = arith.constant 0 : i32
    return %c0_i32, %c0_i32_0 : i32, i32
  }
  func.func @transform_7(%arg0: i32) -> (i32, i32) {
    %c0_i32 = arith.constant 0 : i32
    %c0_i32_0 = arith.constant 0 : i32
    return %arg0, %c0_i32 : i32, i32
  }
}

</mosaic_0001>

<llo_original>
// kernel: mlp_forward.1
$region0: #{mlp_forward.1}
  #allocation0 [shape = 'u32[]', space=smem, size = 0x4, offset = 0x4, fixed_abs, tag = 'smem constant byte address 0x4 - core index']
  #allocation1 [shape = 'u32[144,128]{1,0:T(1,128)}', space=vmem, size = 0x12000, scoped, tag = 'internal scratch']
  %s0 = inlined_call_operand.vmem [shape: f32[256,4], index: 0, kind: input, shape index: {}]
  %s1 = inlined_call_operand.vmem [shape: bf16[8,4], index: 1, kind: input, shape index: {}]
  %s2 = inlined_call_operand.vmem [shape: f32[8,1], index: 2, kind: input, shape index: {}]
  %s3 = inlined_call_operand.vmem [shape: bf16[9,8], index: 3, kind: input, shape index: {}]
  %s4 = inlined_call_operand.vmem [shape: f32[9,1], index: 4, kind: input, shape index: {}]
  %s5 = inlined_call_operand.vmem [shape: bf16[8,9], index: 5, kind: input, shape index: {}]
  %s6 = inlined_call_operand.vmem [shape: f32[8,1], index: 6, kind: input, shape index: {}]
  %s7 = inlined_call_operand.vmem [shape: f32[256,3], index: 7, kind: output, shape index: {}]
  %s8 = sld [smem:[#allocation0]]
  $region61: #{mlp_forward.1} parent=0
    _
  %s10 = ssub.s32 1, %s8
  %s11 = scalar_select 0, %s10, %s8
  loop: start=0, step=1, limit=4
  $region2: #{mlp_forward.1} parent=0 // loop_pre_header
    _
  $region3: #{mlp_forward.1} parent=0 // loop_header
    %s13 = sphi 0, %s17
    %p14 = scmp.ge.s32.totalorder %s13, 4
    %s23 = sphi 0, %s25
    %s26 = sphi 0, %s23
    %s27 = sphi 0, %s26
    %s43 = sphi 0, %s27
    %s47 = sphi 0, %s47
    %s49 = sphi 0, %s47
    %s50 = sphi 0, %s49
    %s64 = sphi 0, %s50
    %s68 = sphi 0, %s68
    %s70 = sphi 0, %s68
    %s71 = sphi 0, %s70
    %s85 = sphi 0, %s71
    %s89 = sphi 0, %s89
    %s91 = sphi 0, %s89
    %s92 = sphi 0, %s91
    %s106 = sphi 0, %s92
    %s110 = sphi 0, %s110
    %s112 = sphi 0, %s110
    %s113 = sphi 0, %s112
    %s127 = sphi 0, %s113
    %s131 = sphi 0, %s131
    %s133 = sphi 0, %s131
    %s134 = sphi 0, %s133
    %s148 = sphi 0, %s134
    %s152 = sphi 0, %s152
    %s154 = sphi 0, %s152
    %s155 = sphi 0, %s154
    %s169 = sphi 0, %s155
    %s175 = sphi 0, %s177
    %s178 = sphi 0, %s175
    %s179 = sphi 0, %s178
    %s195 = sphi 0, %s179
  $region4: #{mlp_forward.1} parent=0 // loop_header_branch
    %16 = sbr.rel (%p14) target = $region8
  $region5: #{mlp_forward.1} parent=0 // loop_body
    %s18 = ssub.s32 %s13, 1
    %s19 = ssub.s32 %s13, 2
    %s20 = sadd.s32 %s13, 1
    %s21 = ssub.s32 %s13, %s20
    %p22 = scmp.eq.s32.totalorder %s21, 0
    %s24 = sadd.s32 %s23, 1
    %s25 = scalar_select %p22, %s23, %s24
    %p28 = pneg %p22
    %p29 = scmp.eq.s32.totalorder %s13, 1
    %p30 = por %p28, %p29
    %p31 = scmp.ne.s32.totalorder %s23, %s26
    %p32 = scmp.eq.s32.totalorder %s13, 0
    %p33 = por %p31, %p32
    %p34 = scmp.ne.s32.totalorder %s23, %s26
    %p35 = scmp.eq.s32.totalorder %s18, 1
    %p36 = por %p34, %p35
    %p37 = scmp.ne.s32.totalorder %s26, %s27
    %p38 = scmp.eq.s32.totalorder %s18, 0
    %p39 = por %p37, %p38
    %p40 = scmp.ne.s32.totalorder %s26, %s27
    %p41 = scmp.eq.s32.totalorder %s19, 1
    %p42 = por %p40, %p41
    %p44 = scmp.ne.s32.totalorder %s27, %s43
    %p45 = scmp.eq.s32.totalorder %s19, 0
    %p46 = por %p44, %p45
    %s48 = sadd.s32 %s47, 1
    %p51 = scmp.eq.s32.totalorder %s13, 1
    %p52 = scmp.ne.s32.totalorder %s47, %s49
    %p53 = scmp.eq.s32.totalorder %s13, 0
    %p54 = por %p52, %p53
    %p55 = scmp.ne.s32.totalorder %s47, %s49
    %p56 = scmp.eq.s32.totalorder %s18, 1
    %p57 = por %p55, %p56
    %p58 = scmp.ne.s32.totalorder %s49, %s50
    %p59 = scmp.eq.s32.totalorder %s18, 0
    %p60 = por %p58, %p59
    %p61 = scmp.ne.s32.totalorder %s49, %s50
    %p62 = scmp.eq.s32.totalorder %s19, 1
    %p63 = por %p61, %p62
    %p65 = scmp.ne.s32.totalorder %s50, %s64
    %p66 = scmp.eq.s32.totalorder %s19, 0
    %p67 = por %p65, %p66
    %s69 = sadd.s32 %s68, 1
    %p72 = scmp.eq.s32.totalorder %s13, 1
    %p73 = scmp.ne.s32.totalorder %s68, %s70
    %p74 = scmp.eq.s32.totalorder %s13, 0
    %p75 = por %p73, %p74
    %p76 = scmp.ne.s32.totalorder %s68, %s70
    %p77 = scmp.eq.s32.totalorder %s18, 1
    %p78 = por %p76, %p77
    %p79 = scmp.ne.s32.totalorder %s70, %s71
    %p80 = scmp.eq.s32.totalorder %s18, 0
    %p81 = por %p79, %p80
    %p82 = scmp.ne.s32.totalorder %s70, %s71
    %p83 = scmp.eq.s32.totalorder %s19, 1
    %p84 = por %p82, %p83
    %p86 = scmp.ne.s32.totalorder %s71, %s85
    %p87 = scmp.eq.s32.totalorder %s19, 0
    %p88 = por %p86, %p87
    %s90 = sadd.s32 %s89, 1
    %p93 = scmp.eq.s32.totalorder %s13, 1
    %p94 = scmp.ne.s32.totalorder %s89, %s91
    %p95 = scmp.eq.s32.totalorder %s13, 0
    %p96 = por %p94, %p95
    %p97 = scmp.ne.s32.totalorder %s89, %s91
    %p98 = scmp.eq.s32.totalorder %s18, 1
    %p99 = por %p97, %p98
    %p100 = scmp.ne.s32.totalorder %s91, %s92
    %p101 = scmp.eq.s32.totalorder %s18, 0
    %p102 = por %p100, %p101
    %p103 = scmp.ne.s32.totalorder %s91, %s92
    %p104 = scmp.eq.s32.totalorder %s19, 1
    %p105 = por %p103, %p104
    %p107 = scmp.ne.s32.totalorder %s92, %s106
    %p108 = scmp.eq.s32.totalorder %s19, 0
    %p109 = por %p107, %p108
    %s111 = sadd.s32 %s110, 1
    %p114 = scmp.eq.s32.totalorder %s13, 1
    %p115 = scmp.ne.s32.totalorder %s110, %s112
    %p116 = scmp.eq.s32.totalorder %s13, 0
    %p117 = por %p115, %p116
    %p118 = scmp.ne.s32.totalorder %s110, %s112
    %p119 = scmp.eq.s32.totalorder %s18, 1
    %p120 = por %p118, %p119
    %p121 = scmp.ne.s32.totalorder %s112, %s113
    %p122 = scmp.eq.s32.totalorder %s18, 0
    %p123 = por %p121, %p122
    %p124 = scmp.ne.s32.totalorder %s112, %s113
    %p125 = scmp.eq.s32.totalorder %s19, 1
    %p126 = por %p124, %p125
    %p128 = scmp.ne.s32.totalorder %s113, %s127
    %p129 = scmp.eq.s32.totalorder %s19, 0
    %p130 = por %p128, %p129
    %s132 = sadd.s32 %s131, 1
    %p135 = scmp.eq.s32.totalorder %s13, 1
    %p136 = scmp.ne.s32.totalorder %s131, %s133
    %p137 = scmp.eq.s32.totalorder %s13, 0
    %p138 = por %p136, %p137
    %p139 = scmp.ne.s32.totalorder %s131, %s133
    %p140 = scmp.eq.s32.totalorder %s18, 1
    %p141 = por %p139, %p140
    %p142 = scmp.ne.s32.totalorder %s133, %s134
    %p143 = scmp.eq.s32.totalorder %s18, 0
    %p144 = por %p142, %p143
    %p145 = scmp.ne.s32.totalorder %s133, %s134
    %p146 = scmp.eq.s32.totalorder %s19, 1
    %p147 = por %p145, %p146
    %p149 = scmp.ne.s32.totalorder %s134, %s148
    %p150 = scmp.eq.s32.totalorder %s19, 0
    %p151 = por %p149, %p150
    %s153 = sadd.s32 %s152, 1
    %p156 = scmp.eq.s32.totalorder %s13, 1
    %p157 = scmp.ne.s32.totalorder %s152, %s154
    %p158 = scmp.eq.s32.totalorder %s13, 0
    %p159 = por %p157, %p158
    %p160 = scmp.ne.s32.totalorder %s152, %s154
    %p161 = scmp.eq.s32.totalorder %s18, 1
    %p162 = por %p160, %p161
    %p163 = scmp.ne.s32.totalorder %s154, %s155
    %p164 = scmp.eq.s32.totalorder %s18, 0
    %p165 = por %p163, %p164
    %p166 = scmp.ne.s32.totalorder %s154, %s155
    %p167 = scmp.eq.s32.totalorder %s19, 1
    %p168 = por %p166, %p167
    %p170 = scmp.ne.s32.totalorder %s155, %s169
    %p171 = scmp.eq.s32.totalorder %s19, 0
    %p172 = por %p170, %p171
    %s173 = ssub.s32 %s13, %s20
    %p174 = scmp.eq.s32.totalorder %s173, 0
    %s176 = sadd.s32 %s175, 1
    %s177 = scalar_select %p174, %s175, %s176
    %p180 = pneg %p174
    %p181 = scmp.eq.s32.totalorder %s13, 1
    %p182 = por %p180, %p181
    %p183 = scmp.ne.s32.totalorder %s175, %s178
    %p184 = scmp.eq.s32.totalorder %s13, 0
    %p185 = por %p183, %p184
    %p186 = scmp.ne.s32.totalorder %s175, %s178
    %p187 = scmp.eq.s32.totalorder %s18, 1
    %p188 = por %p186, %p187
    %p189 = scmp.ne.s32.totalorder %s178, %s179
    %p190 = scmp.eq.s32.totalorder %s18, 0
    %p191 = por %p189, %p190
    %p192 = scmp.ne.s32.totalorder %s178, %s179
    %p193 = scmp.eq.s32.totalorder %s19, 1
    %p194 = por %p192, %p193
    %p196 = scmp.ne.s32.totalorder %s179, %s195
    %p197 = scmp.eq.s32.totalorder %s19, 0
    %p198 = por %p196, %p197
    %p199 = scmp.le.s32.totalorder 1, %s13
    %p200 = scmp.lt.s32.totalorder %s13, 3
    %p201 = pnand %p199, %p200
    %p202 = pneg %p201
    // Predicated region
    $region9: #{mlp_forward.1} parent=5 // pred_check
      _
    $region10: #{mlp_forward.1} parent=5 // pred_check_branch
      %204 = sbr.rel (%p201) target = $region12
    $region11: #{mlp_forward.1} parent=5 // pred_region
      %s205 = ssub.s32 %s13, 1
      // Predicated region
      $region13: #{mlp_forward.1} parent=11 // pred_check
        %p206 = pneg %p60
      $region14: #{mlp_forward.1} parent=11 // pred_check_branch
        %208 = sbr.rel (%p206) target = $region16
      $region15: #{mlp_forward.1} parent=11 // pred_region
        _
      $region16: #{mlp_forward.1} parent=11 // pred_fallthru
        _
      // Predicated region
      $region17: #{mlp_forward.1} parent=11 // pred_check
        %p209 = pneg %p81
      $region18: #{mlp_forward.1} parent=11 // pred_check_branch
        %211 = sbr.rel (%p209) target = $region20
      $region19: #{mlp_forward.1} parent=11 // pred_region
        _
      $region20: #{mlp_forward.1} parent=11 // pred_fallthru
        _
      // Predicated region
      $region21: #{mlp_forward.1} parent=11 // pred_check
        %p212 = pneg %p102
      $region22: #{mlp_forward.1} parent=11 // pred_check_branch
        %214 = sbr.rel (%p212) target = $region24
      $region23: #{mlp_forward.1} parent=11 // pred_region
        _
      $region24: #{mlp_forward.1} parent=11 // pred_fallthru
        _
      // Predicated region
      $region25: #{mlp_forward.1} parent=11 // pred_check
        %p215 = pneg %p123
      $region26: #{mlp_forward.1} parent=11 // pred_check_branch
        %217 = sbr.rel (%p215) target = $region28
      $region27: #{mlp_forward.1} parent=11 // pred_region
        _
      $region28: #{mlp_forward.1} parent=11 // pred_fallthru
        _
      // Predicated region
      $region29: #{mlp_forward.1} parent=11 // pred_check
        %p218 = pneg %p144
      $region30: #{mlp_forward.1} parent=11 // pred_check_branch
        %220 = sbr.rel (%p218) target = $region32
      $region31: #{mlp_forward.1} parent=11 // pred_region
        _
      $region32: #{mlp_forward.1} parent=11 // pred_fallthru
        _
      // Predicated region
      $region33: #{mlp_forward.1} parent=11 // pred_check
        %p221 = pneg %p165
      $region34: #{mlp_forward.1} parent=11 // pred_check_branch
        %223 = sbr.rel (%p221) target = $region36
      $region35: #{mlp_forward.1} parent=11 // pred_region
        _
      $region36: #{mlp_forward.1} parent=11 // pred_fallthru
        _
    $region12: #{mlp_forward.1} parent=5 // pred_fallthru
      _
    %p224 = scmp.lt.s32.totalorder %s13, 2
    // Predicated region
    $region37: #{mlp_forward.1} parent=5 // pred_check
      %p225 = pneg %p224
    $region38: #{mlp_forward.1} parent=5 // pred_check_branch
      %227 = sbr.rel (%p225) target = $region40
    $region39: #{mlp_forward.1} parent=5 // pred_region
      // Predicated region
      $region41: #{mlp_forward.1} parent=39 // pred_check
        %p228 = pneg %p33
      $region42: #{mlp_forward.1} parent=39 // pred_check_branch
        %230 = sbr.rel (%p228) target = $region44
      $region43: #{mlp_forward.1} parent=39 // pred_region
        %s231 = smul.u32 16, %s13
        %p232 = scmp.lt.s32.totalorder %s231, 31
        %s233 = scalar_select %p232, %s231, 31
        %s234 = smul.addr %s233, 8
        %s235 = scalar_lea.vmem %s0, %s234
        %s236 = smul.u32 16, %s13
      $region44: #{mlp_forward.1} parent=39 // pred_fallthru
        _
    $region40: #{mlp_forward.1} parent=5 // pred_fallthru
      _
    %p237 = scmp.le.s32.totalorder 1, %s13
    %p238 = scmp.lt.s32.totalorder %s13, 3
    %p239 = pnand %p237, %p238
    %p240 = pneg %p239
    // Predicated region
    $region45: #{mlp_forward.1} parent=5 // pred_check
      _
    $region46: #{mlp_forward.1} parent=5 // pred_check_branch
      %242 = sbr.rel (%p239) target = $region48
    $region47: #{mlp_forward.1} parent=5 // pred_region
      %s243 = ssub.s32 %s13, 1
      %s244 = smul.u32 16, %s18
      %p245 = scmp.lt.s32.totalorder %s244, 31
      %s246 = scalar_select %p245, %s244, 31
      %s247 = smul.addr %s246, 8
      %s248 = scalar_lea.vmem %s0, %s247
      %p249 = pneg %p39
      %p250 = pneg %p36
      %p251 = pneg %p60
      %p252 = pneg %p57
      %p253 = pneg %p81
      %p254 = pneg %p78
      %p255 = pneg %p102
      %p256 = pneg %p99
      %p257 = pneg %p123
      %p258 = pneg %p120
      %p259 = pneg %p144
      %p260 = pneg %p141
      %p261 = pneg %p165
      %p262 = pneg %p162
      %p263 = pneg %p191
      %p264 = pneg %p188
      %s265 = smul.u32 16, %s18
      %p266 = scmp.lt.s32.totalorder %s265, 31
      %s267 = scalar_select %p266, %s265, 31
      %s268 = smul.addr %s267, 8
      %s269 = scalar_lea.vmem %s7, %s268
      %s270 = smul.u32 16, %s18
      %p271 = scmp.lt.s32.totalorder %s270, 31
      %s272 = scalar_select %p271, %s270, 31
      %s273 = smul.addr %s272, 8
      %s274 = scalar_lea.vmem %s0, %s273
      %s275 = smul.u32 16, %s18
      %s276 = smul.u32 16, %s18
      %p277 = scmp.lt.s32.totalorder %s276, 31
      %s278 = scalar_select %p277, %s276, 31
      %s279 = smul.addr %s278, 8
      %s280 = scalar_lea.vmem %s7, %s279
      %s281 = smul.u32 16, %s18
      %v283 = vld [vmem:[%s274] sm:$0xff]
      %v284 = vld [vmem:[%s274 + $0x8] sm:$0xff]
      %v285 = vld [vmem:[%s274 + $0x10] sm:$0xff]
      %v286 = vld [vmem:[%s274 + $0x18] sm:$0xff]
      %v287 = vld [vmem:[%s274 + $0x20] sm:$0xff]
      %v288 = vld [vmem:[%s274 + $0x28] sm:$0xff]
      %v289 = vld [vmem:[%s274 + $0x30] sm:$0xff]
      %v290 = vld [vmem:[%s274 + $0x38] sm:$0xff]
      %v291 = vld [vmem:[%s274 + $0x40] sm:$0xff]
      %v292 = vld [vmem:[%s274 + $0x48] sm:$0xff]
      %v293 = vld [vmem:[%s274 + $0x50] sm:$0xff]
      %v294 = vld [vmem:[%s274 + $0x58] sm:$0xff]
      %v295 = vld [vmem:[%s274 + $0x60] sm:$0xff]
      %v296 = vld [vmem:[%s274 + $0x68] sm:$0xff]
      %v297 = vld [vmem:[%s274 + $0x70] sm:$0xff]
      %v298 = vld [vmem:[%s274 + $0x78] sm:$0xff]
      %v299 = vpack.c.bf16 %v284, %v283
      %v300 = vpack.c.bf16 %v286, %v285
      %v301 = vpack.c.bf16 %v288, %v287
      %v302 = vpack.c.bf16 %v290, %v289
      %v303 = vpack.c.bf16 %v292, %v291
      %v304 = vpack.c.bf16 %v294, %v293
      %v305 = vpack.c.bf16 %v296, %v295
      %v306 = vpack.c.bf16 %v298, %v297
      %v307 = vld [vmem:[%s1] sm:$0xf]
      %v308 = vld [vmem:[%s2] sm:$0xff]
      %310 = vset.pattern.permute.xlu0 0
      %311 = vperm.xlu0 %310, %v308
      %v312 = vpop.permute.xlu0 %311
      %vm314 = vcmask 31744
      %v316 = vsel %vm314, %v307, 0
      %v319 = vsel %vm314, %v299, 0
      %v322 = vsel %vm314, %v300, 0
      %v325 = vsel %vm314, %v301, 0
      %v328 = vsel %vm314, %v302, 0
      %v331 = vsel %vm314, %v303, 0
      %v334 = vsel %vm314, %v304, 0
      %v337 = vsel %vm314, %v305, 0
      %v340 = vsel %vm314, %v306, 0
      %342 = vmatprep.subr.bf16.mxu0 0
      %343 = vmatpush1.bf16.xpose.msra.mxu0 %v319
      %344 = vmatprep.subr.bf16.mxu0 0
      %345 = vmatpush1.bf16.xpose.msra.mxu0 %v322
      %346 = vmatprep.subr.bf16.mxu0 0
      %347 = vmatpush1.bf16.xpose.msra.mxu0 %v325
      %348 = vmatprep.subr.bf16.mxu0 0
      %349 = vmatpush1.bf16.xpose.msra.mxu0 %v328
      %350 = vmatprep.subr.bf16.mxu0 0
      %351 = vmatpush1.bf16.xpose.msra.mxu0 %v331
      %352 = vmatprep.subr.bf16.mxu0 0
      %353 = vmatpush1.bf16.xpose.msra.mxu0 %v334
      %354 = vmatprep.subr.bf16.mxu0 0
      %355 = vmatpush1.bf16.xpose.msra.mxu0 %v337
      %356 = vmatprep.subr.bf16.mxu0 0
      %357 = vmatpush1.bf16.xpose.msra.mxu0 %v340
      %358 = vmatprep.subr.bf16.mxu0 0
      %359 = vmatpush1.bf16.xpose.msra.mxu0 0
      %360 = vmatprep.subr.bf16.mxu0 0
      %361 = vmatpush1.bf16.xpose.msra.mxu0 0
      %362 = vmatprep.subr.bf16.mxu0 0
      %363 = vmatpush1.bf16.xpose.msra.mxu0 0
      %364 = vmatprep.subr.bf16.mxu0 0
      %365 = vmatpush1.bf16.xpose.msra.mxu0 0
      %366 = vmatprep.subr.bf16.mxu0 0
      %367 = vmatpush1.bf16.xpose.msra.mxu0 0
      %368 = vmatprep.subr.bf16.mxu0 0
      %369 = vmatpush1.bf16.xpose.msra.mxu0 0
      %370 = vmatprep.subr.bf16.mxu0 0
      %371 = vmatpush1.bf16.xpose.msra.mxu0 0
      %372 = vmatprep.subr.bf16.mxu0 0
      %373 = vmatpush1.bf16.xpose.msra.mxu0 0
      %374 = vmatprep.mubr.bf16.mxu0 0
      %375 = vmatmul.mubr.bf16.gmra.mrb[0].mxu0 %v316
      %v376 = vpop.f32.mrb[0].mxu0
      %v377 = vadd.f32 %v312, %v376
      %v378 = vpop.f32.mrb[0].mxu0
      %v379 = vpop.f32.mrb[0].mxu0
      %v380 = vpop.f32.mrb[0].mxu0
      %381 = vdwg.mxu0
      %v382 = vmax.f32 %v377, 0.0
      %v383 = vld [vmem:[%s3] sm:$0xf]
      %v384 = vld [vmem:[%s3 + $0x4] sm:$0x1]
      %v385 = vpack.c.bf16 %v382, %v382
      %v386 = vld [vmem:[%s4] sm:$0xff]
      %v387 = vld [vmem:[%s4 + $0x8] sm:$0x1]
      %389 = vset.pattern.permute.xlu0 0
      %390 = vperm.xlu0 %389, %v386
      %v391 = vpop.permute.xlu0 %390
      %394 = vset.pattern.permute.xlu0 0
      %395 = vperm.xlu0 %394, %v387
      %v396 = vpop.permute.xlu0 %395
      %v400 = vunpack.c.l.b16 %v383
      %v401 = vunpack.c.l.b16 %v384
      %v402 = vpack.c.b16 %v401, %v400
      %vm403 = vcmask 64512
      %v405 = vsel %vm403, %v402, 0
      %vm407 = vcmask 1043456
      %v409 = vsel %vm407, %v385, 0
      %411 = vmatprep.subr.bf16.mxu0 0
      %412 = vmatpush1.bf16.msra.mxu0 %v409
      %413 = vmatprep.subr.bf16.mxu0 0
      %414 = vmatpush1.bf16.msra.mxu0 0
      %415 = vmatprep.subr.bf16.mxu0 0
      %416 = vmatpush1.bf16.msra.mxu0 0
      %417 = vmatprep.subr.bf16.mxu0 0
      %418 = vmatpush1.bf16.msra.mxu0 0
      %419 = vmatprep.subr.bf16.mxu0 0
      %420 = vmatpush1.bf16.msra.mxu0 0
      %421 = vmatprep.subr.bf16.mxu0 0
      %422 = vmatpush1.bf16.msra.mxu0 0
      %423 = vmatprep.subr.bf16.mxu0 0
      %424 = vmatpush1.bf16.msra.mxu0 0
      %425 = vmatprep.subr.bf16.mxu0 0
      %426 = vmatpush1.bf16.msra.mxu0 0
      %427 = vmatprep.subr.bf16.mxu0 0
      %428 = vmatpush1.bf16.msra.mxu0 0
      %429 = vmatprep.subr.bf16.mxu0 0
      %430 = vmatpush1.bf16.msra.mxu0 0
      %431 = vmatprep.subr.bf16.mxu0 0
      %432 = vmatpush1.bf16.msra.mxu0 0
      %433 = vmatprep.subr.bf16.mxu0 0
      %434 = vmatpush1.bf16.msra.mxu0 0
      %435 = vmatprep.subr.bf16.mxu0 0
      %436 = vmatpush1.bf16.msra.mxu0 0
      %437 = vmatprep.subr.bf16.mxu0 0
      %438 = vmatpush1.bf16.msra.mxu0 0
      %439 = vmatprep.subr.bf16.mxu0 0
      %440 = vmatpush1.bf16.msra.mxu0 0
      %441 = vmatprep.subr.bf16.mxu0 0
      %442 = vmatpush1.bf16.msra.mxu0 0
      %443 = vmatprep.mubr.bf16.mxu0 0
      %444 = vmatmul.mubr.bf16.gmra.mrb[0].mxu0 %v405
      %v445 = vpop.f32.mrb[0].mxu0
      %v446 = vadd.f32 %v391, %v445
      %v447 = vpop.f32.mrb[0].mxu0
      %v448 = vpop.f32.mrb[0].mxu0
      %v449 = vadd.f32 %v396, %v448
      %v450 = vpop.f32.mrb[0].mxu0
      %451 = vdwg.mxu0
      %v452 = vmax.f32 %v446, 0.0
      %v453 = vmax.f32 %v449, 0.0
      %v454 = vld [vmem:[%s5] sm:$0xf]
      %v455 = vpack.c.bf16 %v453, %v452
      %v456 = vld [vmem:[%s6] sm:$0xff]
      %458 = vset.pattern.permute.xlu0 0
      %459 = vperm.xlu0 %458, %v456
      %v460 = vpop.permute.xlu0 %459
      %vm462 = vcmask 72704
      %v464 = vsel %vm462, %v454, 0
      %vm466 = vcmask 1044480
      %v467 = vsel %vm407, 4294967295, 65535
      %v468 = vsel %vm466, %v467, 0
      %v470 = vand.u32 %v455, %v468
      %472 = vmatprep.subr.bf16.mxu0 0
      %473 = vmatpush1.bf16.msra.mxu0 %v470
      %474 = vmatprep.subr.bf16.mxu0 0
      %475 = vmatpush1.bf16.msra.mxu0 0
      %476 = vmatprep.subr.bf16.mxu0 0
      %477 = vmatpush1.bf16.msra.mxu0 0
      %478 = vmatprep.subr.bf16.mxu0 0
      %479 = vmatpush1.bf16.msra.mxu0 0
      %480 = vmatprep.subr.bf16.mxu0 0
      %481 = vmatpush1.bf16.msra.mxu0 0
      %482 = vmatprep.subr.bf16.mxu0 0
      %483 = vmatpush1.bf16.msra.mxu0 0
      %484 = vmatprep.subr.bf16.mxu0 0
      %485 = vmatpush1.bf16.msra.mxu0 0
      %486 = vmatprep.subr.bf16.mxu0 0
      %487 = vmatpush1.bf16.msra.mxu0 0
      %488 = vmatprep.subr.bf16.mxu0 0
      %489 = vmatpush1.bf16.msra.mxu0 0
      %490 = vmatprep.subr.bf16.mxu0 0
      %491 = vmatpush1.bf16.msra.mxu0 0
      %492 = vmatprep.subr.bf16.mxu0 0
      %493 = vmatpush1.bf16.msra.mxu0 0
      %494 = vmatprep.subr.bf16.mxu0 0
      %495 = vmatpush1.bf16.msra.mxu0 0
      %496 = vmatprep.subr.bf16.mxu0 0
      %497 = vmatpush1.bf16.msra.mxu0 0
      %498 = vmatprep.subr.bf16.mxu0 0
      %499 = vmatpush1.bf16.msra.mxu0 0
      %500 = vmatprep.subr.bf16.mxu0 0
      %501 = vmatpush1.bf16.msra.mxu0 0
      %502 = vmatprep.subr.bf16.mxu0 0
      %503 = vmatpush1.bf16.msra.mxu0 0
      %504 = vmatprep.mubr.bf16.mxu0 0
      %505 = vmatmul.mubr.bf16.gmra.mrb[0].mxu0 %v464
      %v506 = vpop.f32.mrb[0].mxu0
      %v507 = vadd.f32 %v460, %v506
      %v508 = vpop.f32.mrb[0].mxu0
      %v509 = vpop.f32.mrb[0].mxu0
      %v510 = vpop.f32.mrb[0].mxu0
      %511 = vdwg.mxu0
      %512 = vxpose.xlu0.b32.start [1/16] %v507, 128
      %513 = vxpose.xlu0.b32.cont [2/16] 0.0, 128
      %514 = vxpose.xlu0.b32.cont [3/16] 0.0, 128
      %515 = vxpose.xlu0.b32.cont [4/16] 0.0, 128
      %516 = vxpose.xlu0.b32.cont [5/16] 0.0, 128
      %517 = vxpose.xlu0.b32.cont [6/16] 0.0, 128
      %518 = vxpose.xlu0.b32.cont [7/16] 0.0, 128
      %519 = vxpose.xlu0.b32.cont [8/16] 0.0, 128
      %520 = vxpose.xlu0.b32.cont [9/16] 0.0, 128
      %521 = vxpose.xlu0.b32.cont [10/16] 0.0, 128
      %522 = vxpose.xlu0.b32.cont [11/16] 0.0, 128
      %523 = vxpose.xlu0.b32.cont [12/16] 0.0, 128
      %524 = vxpose.xlu0.b32.cont [13/16] 0.0, 128
      %525 = vxpose.xlu0.b32.cont [14/16] 0.0, 128
      %526 = vxpose.xlu0.b32.cont [15/16] 0.0, 128
      %527 = vxpose.xlu0.b32.end [16/16] 0.0, 128
      %v528 = vpop.trf.xlu0
      %v529 = vpop.trf.xlu0
      %v530 = vpop.trf.xlu0
      %v531 = vpop.trf.xlu0
      %v532 = vpop.trf.xlu0
      %v533 = vpop.trf.xlu0
      %v534 = vpop.trf.xlu0
      %v535 = vpop.trf.xlu0
      %v536 = vpop.trf.xlu0
      %v537 = vpop.trf.xlu0
      %v538 = vpop.trf.xlu0
      %v539 = vpop.trf.xlu0
      %v540 = vpop.trf.xlu0
      %v541 = vpop.trf.xlu0
      %v542 = vpop.trf.xlu0
      %v543 = vpop.trf.xlu0
      %vm544 = vcmask 23552
      %545 = vst.msk [vmem:[%s280] sm:$0xff] %vm544, %v528
      %546 = vst.msk [vmem:[%s280 + $0x8] sm:$0xff] %vm544, %v529
      %547 = vst.msk [vmem:[%s280 + $0x10] sm:$0xff] %vm544, %v530
      %548 = vst.msk [vmem:[%s280 + $0x18] sm:$0xff] %vm544, %v531
      %549 = vst.msk [vmem:[%s280 + $0x20] sm:$0xff] %vm544, %v532
      %550 = vst.msk [vmem:[%s280 + $0x28] sm:$0xff] %vm544, %v533
      %551 = vst.msk [vmem:[%s280 + $0x30] sm:$0xff] %vm544, %v534
      %552 = vst.msk [vmem:[%s280 + $0x38] sm:$0xff] %vm544, %v535
      %553 = vst.msk [vmem:[%s280 + $0x40] sm:$0xff] %vm544, %v536
      %554 = vst.msk [vmem:[%s280 + $0x48] sm:$0xff] %vm544, %v537
      %555 = vst.msk [vmem:[%s280 + $0x50] sm:$0xff] %vm544, %v538
      %556 = vst.msk [vmem:[%s280 + $0x58] sm:$0xff] %vm544, %v539
      %557 = vst.msk [vmem:[%s280 + $0x60] sm:$0xff] %vm544, %v540
      %558 = vst.msk [vmem:[%s280 + $0x68] sm:$0xff] %vm544, %v541
      %559 = vst.msk [vmem:[%s280 + $0x70] sm:$0xff] %vm544, %v542
      %560 = vst.msk [vmem:[%s280 + $0x78] sm:$0xff] %vm544, %v543
      %s561 = smul.u32 16, %s18
      %p562 = scmp.lt.s32.totalorder %s561, 31
      %s563 = scalar_select %p562, %s561, 31
      %s564 = smul.addr %s563, 8
      %s565 = scalar_lea.vmem %s7, %s564
      // Predicated region
      $region49: #{mlp_forward.1} parent=47 // pred_check
        %p566 = pneg %p188
      $region50: #{mlp_forward.1} parent=47 // pred_check_branch
        %568 = sbr.rel (%p566) target = $region52
      $region51: #{mlp_forward.1} parent=47 // pred_region
        %s569 = smul.u32 16, %s18
      $region52: #{mlp_forward.1} parent=47 // pred_fallthru
        _
    $region48: #{mlp_forward.1} parent=5 // pred_fallthru
      _
    %p570 = scmp.le.s32.totalorder 2, %s13
    // Predicated region
    $region53: #{mlp_forward.1} parent=5 // pred_check
      %p571 = pneg %p570
    $region54: #{mlp_forward.1} parent=5 // pred_check_branch
      %573 = sbr.rel (%p571) target = $region56
    $region55: #{mlp_forward.1} parent=5 // pred_region
      %s574 = ssub.s32 %s13, 2
      // Predicated region
      $region57: #{mlp_forward.1} parent=55 // pred_check
        %p575 = pneg %p194
      $region58: #{mlp_forward.1} parent=55 // pred_check_branch
        %577 = sbr.rel (%p575) target = $region60
      $region59: #{mlp_forward.1} parent=55 // pred_region
        %s578 = smul.u32 16, %s19
        %p579 = scmp.lt.s32.totalorder %s578, 31
        %s580 = scalar_select %p579, %s578, 31
        %s581 = smul.addr %s580, 8
        %s582 = scalar_lea.vmem %s7, %s581
      $region60: #{mlp_forward.1} parent=55 // pred_fallthru
        _
    $region56: #{mlp_forward.1} parent=5 // pred_fallthru
      _
  $region6: #{mlp_forward.1} parent=0 // loop_footer
    %s17 = sadd.s32 1, %s13
  $region7: #{mlp_forward.1} parent=0 // loop_footer_branch
    %12 = sbr.rel target = $region3
  $region8: #{mlp_forward.1} parent=0 // loop_exit
    _

</llo_original>
